<compile_context>
chip_gen: v5e
topology: v5e:2x2
jax: 0.10.0
libtpu: 0.0.40
codegen_flags: <defaults>
</compile_context>

<pallas_src>
import functools

import jax
import jax.numpy as jnp
import numpy as np
from jax.experimental import pallas as pl
from jax.experimental.pallas import tpu as pltpu

LANE = 128     # f32 lane width
SUBLANE = 8    # f32 sublane width
MAX_ROW_TILE = 256


def _round_up(x, m):
    return ((x + m - 1) // m) * m


# ------------------------------ fused kernel ---------------------------------
def _fused_kernel(x_ref, w1_ref, b1_ref, w2_ref, b2_ref, w3_ref, b3_ref,
                  wh_ref, bh_ref, posw_ref, val_ref, elems_ref):
    # MLP layer 1 (+ReLU): bf16 operands on the MXU, f32 accumulate + f32 epilogue.
    h = jnp.dot(x_ref[...], w1_ref[...], preferred_element_type=jnp.float32)
    h = jnp.maximum(h + b1_ref[...], 0.0)
    # MLP layer 2 (+ReLU)
    h = jnp.dot(h.astype(jnp.bfloat16), w2_ref[...], preferred_element_type=jnp.float32)
    h = jnp.maximum(h + b2_ref[...], 0.0)
    # MLP layer 3 (no ReLU)
    h = jnp.dot(h.astype(jnp.bfloat16), w3_ref[...],
                preferred_element_type=jnp.float32) + b3_ref[...]

    # Fused head: columns [0:Eo_p] = elemnet latent part, [Eo_p:] = valnet logits.
    head = jnp.dot(h.astype(jnp.bfloat16), wh_ref[...],
                   preferred_element_type=jnp.float32) + bh_ref[...]

    eo = elems_ref.shape[-1]          # Eo_p, a multiple of 128 -> aligned lane views below
    # Set-size (valnet) logits: only the valnet lane block is written back.
    val_ref[...] = head[:, eo:].astype(val_ref.dtype)

    # Decoder one-hot position == row-select of the elemnet position weight rows:
    #   elems[b, p, :] = head_elem[b, :] + posw[p, :]
    # emitted directly in (rows, max_n, out) layout so the wrapper needs no transpose.
    elems = head[:, :eo][:, None, :] + posw_ref[...][None, :, :]
    elems_ref[...] = elems.astype(elems_ref.dtype)


def _fused_call(xp, w1, b1, w2, b2, w3, b3, wh, bh, posw, *, tm):
    B_pad, Din_p = xp.shape
    Mid_p = w1.shape[1]
    Hid_p = w3.shape[1]
    Hc_p = wh.shape[1]
    N_pad, Eo_p = posw.shape
    Nv_p = Hc_p - Eo_p
    n_tiles = B_pad // tm

    def const2(i):
        return (0, 0)

    # VMEM budget: resident weights (single copy, constant index_map) plus
    # double-buffered x / val / elems row tiles, with a little headroom.
    weight_bytes = sum(int(a.size) * a.dtype.itemsize
                       for a in (w1, b1, w2, b2, w3, b3, wh, bh, posw))
    tile_bytes = 2 * (tm * Din_p * 2 + tm * Nv_p * 4 + tm * N_pad * Eo_p * 4)
    vmem_limit = int(min(max(weight_bytes + tile_bytes + (4 << 20), 16 << 20), 64 << 20))

    val, elems = pl.pallas_call(
        _fused_kernel,
        out_shape=(
            jax.ShapeDtypeStruct((B_pad, Nv_p), jnp.float32),
            jax.ShapeDtypeStruct((B_pad, N_pad, Eo_p), jnp.float32),
        ),
        grid=(n_tiles,),
        in_specs=[
            pl.BlockSpec((tm, Din_p), lambda i: (i, 0)),
            pl.BlockSpec((Din_p, Mid_p), const2), pl.BlockSpec((1, Mid_p), const2),
            pl.BlockSpec((Mid_p, Mid_p), const2), pl.BlockSpec((1, Mid_p), const2),
            pl.BlockSpec((Mid_p, Hid_p), const2), pl.BlockSpec((1, Hid_p), const2),
            pl.BlockSpec((Hid_p, Hc_p), const2), pl.BlockSpec((1, Hc_p), const2),
            pl.BlockSpec((N_pad, Eo_p), const2),
        ],
        out_specs=(
            pl.BlockSpec((tm, Nv_p), lambda i: (i, 0)),
            pl.BlockSpec((tm, N_pad, Eo_p), lambda i: (i, 0, 0)),
        ),
        compiler_params=pltpu.CompilerParams(
            dimension_semantics=("parallel",),     # v7x: shard row tiles across 2 TCs
            vmem_limit_bytes=vmem_limit,
        ),
    )(xp, w1, b1, w2, b2, w3, b3, wh, bh, posw)
    return val, elems


# --------------------------- parameter creation ------------------------------
def _init_linear(key, fan_in, fan_out):
    kw, kb = jax.random.split(key)
    bound = 1.0 / np.sqrt(fan_in)
    w = jax.random.uniform(kw, (fan_in, fan_out), jnp.float32, -bound, bound)
    b = jax.random.uniform(kb, (fan_out,), jnp.float32, -bound, bound)
    return w, b


def init_params(key, input_dim, output_dim, max_n, midmult=1.5):
    hidden_dim = input_dim
    mid = int(round(midmult * (input_dim + hidden_dim) / 2))
    keys = jax.random.split(key, 5)
    return {
        "mlp1": _init_linear(keys[0], input_dim, mid),
        "mlp2": _init_linear(keys[1], mid, mid),
        "mlp3": _init_linear(keys[2], mid, hidden_dim),
        "valnet": _init_linear(keys[3], hidden_dim, max_n),            # nlayers_valnet=0
        "elemnet": _init_linear(keys[4], hidden_dim + max_n, output_dim),
    }


def _pad2(a, rows, cols):
    out = jnp.zeros((rows, cols), jnp.float32)
    return out.at[: a.shape[0], : a.shape[1]].set(a)


def pack_params(params, max_n):
    """Zero-pad / fuse weights into lane-dense resident blocks (bf16 for MXU operands)."""
    w1, b1 = params["mlp1"]
    w2, b2 = params["mlp2"]
    w3, b3 = params["mlp3"]
    wv, bv = params["valnet"]
    we, be = params["elemnet"]

    input_dim, mid = w1.shape
    hidden = w3.shape[1]
    output_dim = we.shape[1]

    Din_p = _round_up(input_dim, LANE)
    Mid_p = _round_up(mid, LANE)
    Hid_p = _round_up(hidden, LANE)
    Eo_p = _round_up(output_dim, LANE)   # elemnet-latent lane block: [0, Eo_p)
    Nv_p = _round_up(max_n, LANE)        # valnet lane block starts 128-aligned at Eo_p
    Hc_p = Eo_p + Nv_p
    N_pad = _round_up(max_n, SUBLANE)

    # Fused head weight: [ elemnet latent | valnet ]. Elemnet at lane 0 so the in-kernel
    # column slices head[:, :Eo_p] / head[:, Eo_p:] are free aligned views.
    wh = jnp.zeros((Hid_p, Hc_p), jnp.float32)
    wh = wh.at[:hidden, :output_dim].set(we[:hidden, :])
    wh = wh.at[:hidden, Eo_p:Eo_p + max_n].set(wv)
    bh = jnp.zeros((1, Hc_p), jnp.float32)
    bh = bh.at[0, :output_dim].set(be)
    bh = bh.at[0, Eo_p:Eo_p + max_n].set(bv)

    # Position rows of the elemnet weight (the "one-hot" contribution), f32 (epilogue add).
    posw = jnp.zeros((N_pad, Eo_p), jnp.float32)
    posw = posw.at[:max_n, :output_dim].set(we[hidden:, :])

    packed = dict(
        w1=_pad2(w1, Din_p, Mid_p).astype(jnp.bfloat16),
        b1=_pad2(b1.reshape(1, -1), 1, Mid_p),
        w2=_pad2(w2, Mid_p, Mid_p).astype(jnp.bfloat16),
        b2=_pad2(b2.reshape(1, -1), 1, Mid_p),
        w3=_pad2(w3, Mid_p, Hid_p).astype(jnp.bfloat16),
        b3=_pad2(b3.reshape(1, -1), 1, Hid_p),
        wh=wh.astype(jnp.bfloat16), bh=bh, posw=posw,
    )
    return packed


# ------------------------------- forward ------------------------------------
@functools.partial(jax.jit, static_argnames=("input_dim", "output_dim", "max_n"))
def variable_nn_forward(packed, x, *, input_dim, output_dim, max_n):
    B = x.shape[0]
    Din_p = packed["w1"].shape[0]
    Eo_p = packed["posw"].shape[1]

    # Row (batch) tile: whole batch for small B, MAX_ROW_TILE-row tiles otherwise.
    TM = min(_round_up(max(B, SUBLANE), SUBLANE), MAX_ROW_TILE)
    B_pad = _round_up(max(B, SUBLANE), TM)

    xp = jnp.zeros((B_pad, Din_p), jnp.bfloat16)
    xp = xp.at[:B, :input_dim].set(x.astype(jnp.bfloat16))

    val, elems_full = _fused_call(
        xp,
        packed["w1"], packed["b1"],
        packed["w2"], packed["b2"],
        packed["w3"], packed["b3"],
        packed["wh"], packed["bh"], packed["posw"],
        tm=TM,
    )

    n_logits = val[:B, :max_n]                               # (B, max_n)
    elems = elems_full[:B, :max_n, :output_dim]              # (B, max_n, out), no transpose
    return elems, n_logits


def variable_nn_reference(params, x, max_n):
    # Plain-JAX f32 reference (original one-hot/repeat/concat formulation).
    def lin(z, wb, relu):
        y = z @ wb[0] + wb[1]
        return jnp.maximum(y, 0.0) if relu else y

    h = lin(x, params["mlp1"], True)
    h = lin(h, params["mlp2"], True)
    h = lin(h, params["mlp3"], False)
    n_logits = lin(h, params["valnet"], False)
    B, _ = h.shape
    pos = jnp.tile(jnp.eye(max_n, dtype=h.dtype), (B, 1))
    dec_in = jnp.concatenate([jnp.repeat(h, max_n, axis=0), pos], axis=-1)
    elems = lin(dec_in, params["elemnet"], False).reshape(B, max_n, -1)
    return elems, n_logits


# --------------------------------- main --------------------------------------
if __name__ == "__main__":
    batch = 4
    input_dim = 32
    output_dim = 16
    max_n = 8

    key = jax.random.PRNGKey(0)
    key_x, key_p = jax.random.split(key)

    x = jax.random.normal(key_x, (batch, input_dim), jnp.float32)
    params = init_params(key_p, input_dim, output_dim, max_n)
    packed = pack_params(params, max_n)

    elems, n_logits = variable_nn_forward(
        packed, x, input_dim=input_dim, output_dim=output_dim, max_n=max_n)
    jax.block_until_ready((elems, n_logits))

    ref_elems, ref_logits = variable_nn_reference(params, x, max_n)
    # bf16 MXU operands (f32 accumulation) -> loosened tolerance vs. the f32 reference.
    np.testing.assert_allclose(np.asarray(elems), np.asarray(ref_elems),
                               rtol=2e-2, atol=2e-2)
    np.testing.assert_allclose(np.asarray(n_logits), np.asarray(ref_logits),
                               rtol=2e-2, atol=2e-2)

    assert elems.shape == (batch, max_n, output_dim)
    assert n_logits.shape == (batch, max_n)
    print("KERNEL_OK")
</pallas_src>

<mosaic_0001>
module attributes {stable_mosaic.version = 11 : i64} {
  func.func @_fused_kernel(%arg0: i32, %arg1: memref<8x128xbf16, #tpu.memory_space<vmem>>, %arg2: memref<128x128xbf16, #tpu.memory_space<vmem>>, %arg3: memref<1x128xf32, #tpu.memory_space<vmem>>, %arg4: memref<128x128xbf16, #tpu.memory_space<vmem>>, %arg5: memref<1x128xf32, #tpu.memory_space<vmem>>, %arg6: memref<128x128xbf16, #tpu.memory_space<vmem>>, %arg7: memref<1x128xf32, #tpu.memory_space<vmem>>, %arg8: memref<128x256xbf16, #tpu.memory_space<vmem>>, %arg9: memref<1x256xf32, #tpu.memory_space<vmem>>, %arg10: memref<8x128xf32, #tpu.memory_space<vmem>>, %arg11: memref<8x128xf32, #tpu.memory_space<vmem>>, %arg12: memref<8x8x128xf32, #tpu.memory_space<vmem>>) attributes {dimension_semantics = [#tpu.dimension_semantics<parallel>], iteration_bounds = array<i64: 1>, scalar_prefetch = 0 : i64, scratch_operands = 0 : i64, tpu.core_type = #tpu.core_type<tc>, window_params = [{transform_indices = @transform_0, window_bounds = array<i64: 8, 128>}, {pipeline_mode = #tpu.pipeline_mode<synchronous>, transform_indices = @transform_1, window_bounds = array<i64: 128, 128>}, {pipeline_mode = #tpu.pipeline_mode<synchronous>, transform_indices = @transform_2, window_bounds = array<i64: 1, 128>}, {pipeline_mode = #tpu.pipeline_mode<synchronous>, transform_indices = @transform_3, window_bounds = array<i64: 128, 128>}, {pipeline_mode = #tpu.pipeline_mode<synchronous>, transform_indices = @transform_4, window_bounds = array<i64: 1, 128>}, {pipeline_mode = #tpu.pipeline_mode<synchronous>, transform_indices = @transform_5, window_bounds = array<i64: 128, 128>}, {pipeline_mode = #tpu.pipeline_mode<synchronous>, transform_indices = @transform_6, window_bounds = array<i64: 1, 128>}, {pipeline_mode = #tpu.pipeline_mode<synchronous>, transform_indices = @transform_7, window_bounds = array<i64: 128, 256>}, {pipeline_mode = #tpu.pipeline_mode<synchronous>, transform_indices = @transform_8, window_bounds = array<i64: 1, 256>}, {pipeline_mode = #tpu.pipeline_mode<synchronous>, transform_indices = @transform_9, window_bounds = array<i64: 8, 128>}, {transform_indices = @transform_10, window_bounds = array<i64: 8, 128>}, {transform_indices = @transform_11, window_bounds = array<i64: 8, 8, 128>}]} {
    %c0 = arith.constant 0 : index
    %c0_0 = arith.constant 0 : index
    %0 = vector.load %arg1[%c0, %c0_0] : memref<8x128xbf16, #tpu.memory_space<vmem>>, vector<8x128xbf16>
    %c0_1 = arith.constant 0 : index
    %c0_2 = arith.constant 0 : index
    %1 = vector.load %arg2[%c0_1, %c0_2] : memref<128x128xbf16, #tpu.memory_space<vmem>>, vector<128x128xbf16>
    %cst = arith.constant dense<0.000000e+00> : vector<8x128xf32>
    %2 = tpu.matmul %0, %1, %cst {dimension_numbers = #tpu.dot_dimension_numbers<[1], [0], [0], [1], [0, 0, 1, 1], [], []>} : vector<8x128xbf16>, vector<128x128xbf16>, vector<8x128xf32> -> vector<8x128xf32>
    %c0_3 = arith.constant 0 : index
    %c0_4 = arith.constant 0 : index
    %3 = vector.load %arg3[%c0_3, %c0_4] : memref<1x128xf32, #tpu.memory_space<vmem>>, vector<1x128xf32>
    %4 = vector.broadcast %3 : vector<1x128xf32> to vector<8x128xf32>
    %5 = arith.addf %2, %4 : vector<8x128xf32>
    %cst_5 = arith.constant 0.000000e+00 : f32
    %6 = vector.broadcast %cst_5 : f32 to vector<8x128xf32>
    %7 = arith.maximumf %5, %6 : vector<8x128xf32>
    %8 = arith.truncf %7 : vector<8x128xf32> to vector<8x128xbf16>
    %c0_6 = arith.constant 0 : index
    %c0_7 = arith.constant 0 : index
    %9 = vector.load %arg4[%c0_6, %c0_7] : memref<128x128xbf16, #tpu.memory_space<vmem>>, vector<128x128xbf16>
    %cst_8 = arith.constant dense<0.000000e+00> : vector<8x128xf32>
    %10 = tpu.matmul %8, %9, %cst_8 {dimension_numbers = #tpu.dot_dimension_numbers<[1], [0], [0], [1], [0, 0, 1, 1], [], []>} : vector<8x128xbf16>, vector<128x128xbf16>, vector<8x128xf32> -> vector<8x128xf32>
    %c0_9 = arith.constant 0 : index
    %c0_10 = arith.constant 0 : index
    %11 = vector.load %arg5[%c0_9, %c0_10] : memref<1x128xf32, #tpu.memory_space<vmem>>, vector<1x128xf32>
    %12 = vector.broadcast %11 : vector<1x128xf32> to vector<8x128xf32>
    %13 = arith.addf %10, %12 : vector<8x128xf32>
    %cst_11 = arith.constant 0.000000e+00 : f32
    %14 = vector.broadcast %cst_11 : f32 to vector<8x128xf32>
    %15 = arith.maximumf %13, %14 : vector<8x128xf32>
    %16 = arith.truncf %15 : vector<8x128xf32> to vector<8x128xbf16>
    %c0_12 = arith.constant 0 : index
    %c0_13 = arith.constant 0 : index
    %17 = vector.load %arg6[%c0_12, %c0_13] : memref<128x128xbf16, #tpu.memory_space<vmem>>, vector<128x128xbf16>
    %cst_14 = arith.constant dense<0.000000e+00> : vector<8x128xf32>
    %18 = tpu.matmul %16, %17, %cst_14 {dimension_numbers = #tpu.dot_dimension_numbers<[1], [0], [0], [1], [0, 0, 1, 1], [], []>} : vector<8x128xbf16>, vector<128x128xbf16>, vector<8x128xf32> -> vector<8x128xf32>
    %c0_15 = arith.constant 0 : index
    %c0_16 = arith.constant 0 : index
    %19 = vector.load %arg7[%c0_15, %c0_16] : memref<1x128xf32, #tpu.memory_space<vmem>>, vector<1x128xf32>
    %20 = vector.broadcast %19 : vector<1x128xf32> to vector<8x128xf32>
    %21 = arith.addf %18, %20 : vector<8x128xf32>
    %22 = arith.truncf %21 : vector<8x128xf32> to vector<8x128xbf16>
    %c0_17 = arith.constant 0 : index
    %c0_18 = arith.constant 0 : index
    %23 = vector.load %arg8[%c0_17, %c0_18] : memref<128x256xbf16, #tpu.memory_space<vmem>>, vector<128x256xbf16>
    %cst_19 = arith.constant dense<0.000000e+00> : vector<8x256xf32>
    %24 = tpu.matmul %22, %23, %cst_19 {dimension_numbers = #tpu.dot_dimension_numbers<[1], [0], [0], [1], [0, 0, 1, 1], [], []>} : vector<8x128xbf16>, vector<128x256xbf16>, vector<8x256xf32> -> vector<8x256xf32>
    %c0_20 = arith.constant 0 : index
    %c0_21 = arith.constant 0 : index
    %25 = vector.load %arg9[%c0_20, %c0_21] : memref<1x256xf32, #tpu.memory_space<vmem>>, vector<1x256xf32>
    %26 = vector.broadcast %25 : vector<1x256xf32> to vector<8x256xf32>
    %27 = arith.addf %24, %26 : vector<8x256xf32>
    %28 = vector.extract_strided_slice %27 {offsets = [0, 128], sizes = [8, 128], strides = [1, 1]} : vector<8x256xf32> to vector<8x128xf32>
    %c0_22 = arith.constant 0 : index
    %c0_23 = arith.constant 0 : index
    %29 = vector.load %arg11[%c0_22, %c0_23] : memref<8x128xf32, #tpu.memory_space<vmem>>, vector<8x128xf32>
    tpu.vector_store %arg11[%c0_22, %c0_23], %28 {strides = array<i32>} : memref<8x128xf32, #tpu.memory_space<vmem>>, vector<8x128xf32>,
    %30 = vector.extract_strided_slice %27 {offsets = [0, 0], sizes = [8, 128], strides = [1, 1]} : vector<8x256xf32> to vector<8x128xf32>
    %31 = vector.shape_cast %30 : vector<8x128xf32> to vector<8x1x128xf32>
    %c0_24 = arith.constant 0 : index
    %c0_25 = arith.constant 0 : index
    %32 = vector.load %arg10[%c0_24, %c0_25] : memref<8x128xf32, #tpu.memory_space<vmem>>, vector<8x128xf32>
    %33 = vector.shape_cast %32 : vector<8x128xf32> to vector<1x8x128xf32>
    %34 = vector.broadcast %31 : vector<8x1x128xf32> to vector<8x8x128xf32>
    %35 = vector.broadcast %33 : vector<1x8x128xf32> to vector<8x8x128xf32>
    %36 = arith.addf %34, %35 : vector<8x8x128xf32>
    %c0_26 = arith.constant 0 : index
    %c0_27 = arith.constant 0 : index
    %c0_28 = arith.constant 0 : index
    %37 = vector.load %arg12[%c0_26, %c0_27, %c0_28] : memref<8x8x128xf32, #tpu.memory_space<vmem>>, vector<8x8x128xf32>
    tpu.vector_store %arg12[%c0_26, %c0_27, %c0_28], %36 {strides = array<i32>} : memref<8x8x128xf32, #tpu.memory_space<vmem>>, vector<8x8x128xf32>,
    return
  }
  func.func @transform_0(%arg0: i32) -> (i32, i32) {
    %c0_i32 = arith.constant 0 : i32
    %c0_i32_0 = arith.constant 0 : i32
    return %arg0, %c0_i32 : i32, i32
  }
  func.func @transform_1(%arg0: i32) -> (i32, i32) {
    %c0_i32 = arith.constant 0 : i32
    %c0_i32_0 = arith.constant 0 : i32
    %c0_i32_1 = arith.constant 0 : i32
    return %c0_i32, %c0_i32_0 : i32, i32
  }
  func.func @transform_2(%arg0: i32) -> (i32, i32) {
    %c0_i32 = arith.constant 0 : i32
    %c0_i32_0 = arith.constant 0 : i32
    %c0_i32_1 = arith.constant 0 : i32
    return %c0_i32, %c0_i32_0 : i32, i32
  }
  func.func @transform_3(%arg0: i32) -> (i32, i32) {
    %c0_i32 = arith.constant 0 : i32
    %c0_i32_0 = arith.constant 0 : i32
    %c0_i32_1 = arith.constant 0 : i32
    return %c0_i32, %c0_i32_0 : i32, i32
  }
  func.func @transform_4(%arg0: i32) -> (i32, i32) {
    %c0_i32 = arith.constant 0 : i32
    %c0_i32_0 = arith.constant 0 : i32
    %c0_i32_1 = arith.constant 0 : i32
    return %c0_i32, %c0_i32_0 : i32, i32
  }
  func.func @transform_5(%arg0: i32) -> (i32, i32) {
    %c0_i32 = arith.constant 0 : i32
    %c0_i32_0 = arith.constant 0 : i32
    %c0_i32_1 = arith.constant 0 : i32
    return %c0_i32, %c0_i32_0 : i32, i32
  }
  func.func @transform_6(%arg0: i32) -> (i32, i32) {
    %c0_i32 = arith.constant 0 : i32
    %c0_i32_0 = arith.constant 0 : i32
    %c0_i32_1 = arith.constant 0 : i32
    return %c0_i32, %c0_i32_0 : i32, i32
  }
  func.func @transform_7(%arg0: i32) -> (i32, i32) {
    %c0_i32 = arith.constant 0 : i32
    %c0_i32_0 = arith.constant 0 : i32
    %c0_i32_1 = arith.constant 0 : i32
    return %c0_i32, %c0_i32_0 : i32, i32
  }
  func.func @transform_8(%arg0: i32) -> (i32, i32) {
    %c0_i32 = arith.constant 0 : i32
    %c0_i32_0 = arith.constant 0 : i32
    %c0_i32_1 = arith.constant 0 : i32
    return %c0_i32, %c0_i32_0 : i32, i32
  }
  func.func @transform_9(%arg0: i32) -> (i32, i32) {
    %c0_i32 = arith.constant 0 : i32
    %c0_i32_0 = arith.constant 0 : i32
    %c0_i32_1 = arith.constant 0 : i32
    return %c0_i32, %c0_i32_0 : i32, i32
  }
  func.func @transform_10(%arg0: i32) -> (i32, i32) {
    %c0_i32 = arith.constant 0 : i32
    %c0_i32_0 = arith.constant 0 : i32
    return %arg0, %c0_i32 : i32, i32
  }
  func.func @transform_11(%arg0: i32) -> (i32, i32, i32) {
    %c0_i32 = arith.constant 0 : i32
    %c0_i32_0 = arith.constant 0 : i32
    %c0_i32_1 = arith.constant 0 : i32
    return %arg0, %c0_i32, %c0_i32_0 : i32, i32, i32
  }
}

</mosaic_0001>

<llo_original>
// kernel: variable_nn_forward.1
$region0: #{variable_nn_forward.1}
  #allocation0 [shape = 'u32[]', space=smem, size = 0x4, offset = 0x4, fixed_abs, tag = 'smem constant byte address 0x4 - core index']
  #allocation1 [shape = 'u32[72,128]{1,0:T(1,128)}', space=vmem, size = 0x9000, scoped, tag = 'internal scratch']
  %s0 = inlined_call_operand.vmem [shape: bf16[8,128], index: 0, kind: input, shape index: {}]
  %s1 = inlined_call_operand.hbm [shape: bf16[128,128], index: 1, kind: input, shape index: {}]
  %s2 = inlined_call_operand.vmem [shape: f32[1,128], index: 2, kind: input, shape index: {}]
  %s3 = inlined_call_operand.hbm [shape: bf16[128,128], index: 3, kind: input, shape index: {}]
  %s4 = inlined_call_operand.vmem [shape: f32[1,128], index: 4, kind: input, shape index: {}]
  %s5 = inlined_call_operand.hbm [shape: bf16[128,128], index: 5, kind: input, shape index: {}]
  %s6 = inlined_call_operand.vmem [shape: f32[1,128], index: 6, kind: input, shape index: {}]
  %s7 = inlined_call_operand.hbm [shape: bf16[128,256], index: 7, kind: input, shape index: {}]
  %s8 = inlined_call_operand.vmem [shape: f32[1,256], index: 8, kind: input, shape index: {}]
  %s9 = inlined_call_operand.vmem [shape: f32[8,128], index: 9, kind: input, shape index: {}]
  %s10 = inlined_call_operand.vmem [shape: f32[8,128], index: 10, kind: output, shape index: {0}]
  %s11 = inlined_call_operand.vmem [shape: f32[8,8,128], index: 11, kind: output, shape index: {1}]
  %12 = xla_tuple %s10, %s11
  %s13 = sld [smem:[#allocation0]]
  $region74: #{variable_nn_forward.1} parent=0
    _
  %s15 = ssub.s32 1, %s13
  %s16 = scalar_select 0, %s15, %s13
  $region1: #{variable_nn_forward.1} parent=0
    #allocation2 [shape = 'u8[32768]{0}', space=vmem, size = 0x8000, scoped, tag = 'input window, operand 1, single buffered']
    #allocation3 [shape = 's32[1]{0}', space=sflag, size = 0x4, scoped, tag = 'scoped memory for variable_nn_forward.1']
    #allocation4 [shape = 'u8[32768]{0}', space=vmem, size = 0x8000, scoped, tag = 'input window, operand 3, single buffered']
    #allocation5 [shape = 's32[1]{0}', space=sflag, size = 0x4, scoped, tag = 'scoped memory for variable_nn_forward.1']
    #allocation6 [shape = 'u8[32768]{0}', space=vmem, size = 0x8000, scoped, tag = 'input window, operand 5, single buffered']
    #allocation7 [shape = 'u8[65536]{0}', space=vmem, size = 0x10000, scoped, tag = 'input window, operand 7, single buffered']
    #allocation8 [shape = 's32[1]{0}', space=sflag, size = 0x4, scoped, tag = 'scoped memory for variable_nn_forward.1']
    %17 = vsyncpa [#allocation3], 0
    %18 = vsyncpa [#allocation5], 0
    %19 = vsyncpa [#allocation8], 0
    // Predicated region
    $region2: #{variable_nn_forward.1} parent=1 // pred_check
      _
    $region3: #{variable_nn_forward.1} parent=1 // pred_check_branch
      %21 = sbr.rel (0) target = $region5
    $region4: #{variable_nn_forward.1} parent=1 // pred_region
      _
    $region5: #{variable_nn_forward.1} parent=1 // pred_fallthru
      _
    // Predicated region
    $region6: #{variable_nn_forward.1} parent=1 // pred_check
      _
    $region7: #{variable_nn_forward.1} parent=1 // pred_check_branch
      %23 = sbr.rel (0) target = $region9
    $region8: #{variable_nn_forward.1} parent=1 // pred_region
      %25 = vsyncadd [#allocation3], 0
      %s26 = sshll.u32 %s1, 4
      %s27 = int_to_ptr.hbm [resolvable:$true] %s26
      %s28 = sshll.u32 [#allocation2], 4
      %s29 = int_to_ptr.vmem [resolvable:$true] %s28
      %34 = dma.hbm_to_vmem [thread:$0]  %s27, 1024, %s29, [#allocation3], 64, 64, 4
    $region9: #{variable_nn_forward.1} parent=1 // pred_fallthru
      _
    // Predicated region
    $region10: #{variable_nn_forward.1} parent=1 // pred_check
      _
    $region11: #{variable_nn_forward.1} parent=1 // pred_check_branch
      %36 = sbr.rel (0) target = $region13
    $region12: #{variable_nn_forward.1} parent=1 // pred_region
      _
    $region13: #{variable_nn_forward.1} parent=1 // pred_fallthru
      _
    // Predicated region
    $region14: #{variable_nn_forward.1} parent=1 // pred_check
      _
    $region15: #{variable_nn_forward.1} parent=1 // pred_check_branch
      %38 = sbr.rel (0) target = $region17
    $region16: #{variable_nn_forward.1} parent=1 // pred_region
      %40 = vsyncadd [#allocation5], 0
      %s41 = sshll.u32 %s3, 4
      %s42 = int_to_ptr.hbm [resolvable:$true] %s41
      %s43 = sshll.u32 [#allocation4], 4
      %s44 = int_to_ptr.vmem [resolvable:$true] %s43
      %49 = dma.hbm_to_vmem [thread:$0]  %s42, 1024, %s44, [#allocation5], 64, 64, 4
    $region17: #{variable_nn_forward.1} parent=1 // pred_fallthru
      _
    // Predicated region
    $region18: #{variable_nn_forward.1} parent=1 // pred_check
      _
    $region19: #{variable_nn_forward.1} parent=1 // pred_check_branch
      %51 = sbr.rel (0) target = $region21
    $region20: #{variable_nn_forward.1} parent=1 // pred_region
      _
    $region21: #{variable_nn_forward.1} parent=1 // pred_fallthru
      _
    // Predicated region
    $region22: #{variable_nn_forward.1} parent=1 // pred_check
      _
    $region23: #{variable_nn_forward.1} parent=1 // pred_check_branch
      %53 = sbr.rel (0) target = $region25
    $region24: #{variable_nn_forward.1} parent=1 // pred_region
      %55 = vsyncadd [#allocation5], 0
      %s56 = sshll.u32 %s5, 4
      %s57 = int_to_ptr.hbm [resolvable:$true] %s56
      %s58 = sshll.u32 [#allocation6], 4
      %s59 = int_to_ptr.vmem [resolvable:$true] %s58
      %64 = dma.hbm_to_vmem [thread:$0]  %s57, 1024, %s59, [#allocation5], 64, 64, 4
    $region25: #{variable_nn_forward.1} parent=1 // pred_fallthru
      _
    // Predicated region
    $region26: #{variable_nn_forward.1} parent=1 // pred_check
      _
    $region27: #{variable_nn_forward.1} parent=1 // pred_check_branch
      %66 = sbr.rel (0) target = $region29
    $region28: #{variable_nn_forward.1} parent=1 // pred_region
      _
    $region29: #{variable_nn_forward.1} parent=1 // pred_fallthru
      _
    // Predicated region
    $region30: #{variable_nn_forward.1} parent=1 // pred_check
      _
    $region31: #{variable_nn_forward.1} parent=1 // pred_check_branch
      %68 = sbr.rel (0) target = $region33
    $region32: #{variable_nn_forward.1} parent=1 // pred_region
      %70 = vsyncadd [#allocation8], 0
      %s71 = sshll.u32 %s7, 4
      %s72 = int_to_ptr.hbm [resolvable:$true] %s71
      %s73 = sshll.u32 [#allocation7], 4
      %s74 = int_to_ptr.vmem [resolvable:$true] %s73
      %79 = dma.hbm_to_vmem [thread:$0]  %s72, 2048, %s74, [#allocation8], 128, 128, 8
    $region33: #{variable_nn_forward.1} parent=1 // pred_fallthru
      _
    // Predicated region
    $region34: #{variable_nn_forward.1} parent=1 // pred_check
      _
    $region35: #{variable_nn_forward.1} parent=1 // pred_check_branch
      %81 = sbr.rel (0) target = $region37
    $region36: #{variable_nn_forward.1} parent=1 // pred_region
      _
    $region37: #{variable_nn_forward.1} parent=1 // pred_fallthru
      _
    // Predicated region
    $region38: #{variable_nn_forward.1} parent=1 // pred_check
      _
    $region39: #{variable_nn_forward.1} parent=1 // pred_check_branch
      %83 = sbr.rel (0) target = $region41
    $region40: #{variable_nn_forward.1} parent=1 // pred_region
      _
    $region41: #{variable_nn_forward.1} parent=1 // pred_fallthru
      _
    // Predicated region
    $region42: #{variable_nn_forward.1} parent=1 // pred_check
      _
    $region43: #{variable_nn_forward.1} parent=1 // pred_check_branch
      %85 = sbr.rel (0) target = $region45
    $region44: #{variable_nn_forward.1} parent=1 // pred_region
      %87 = dma.done [#allocation3], 1024
    $region45: #{variable_nn_forward.1} parent=1 // pred_fallthru
      _
    // Predicated region
    $region46: #{variable_nn_forward.1} parent=1 // pred_check
      _
    $region47: #{variable_nn_forward.1} parent=1 // pred_check_branch
      %89 = sbr.rel (0) target = $region49
    $region48: #{variable_nn_forward.1} parent=1 // pred_region
      %91 = dma.done [#allocation5], 1024
    $region49: #{variable_nn_forward.1} parent=1 // pred_fallthru
      _
    // Predicated region
    $region50: #{variable_nn_forward.1} parent=1 // pred_check
      _
    $region51: #{variable_nn_forward.1} parent=1 // pred_check_branch
      %93 = sbr.rel (0) target = $region53
    $region52: #{variable_nn_forward.1} parent=1 // pred_region
      %95 = dma.done [#allocation5], 1024
    $region53: #{variable_nn_forward.1} parent=1 // pred_fallthru
      _
    // Predicated region
    $region54: #{variable_nn_forward.1} parent=1 // pred_check
      _
    $region55: #{variable_nn_forward.1} parent=1 // pred_check_branch
      %97 = sbr.rel (0) target = $region57
    $region56: #{variable_nn_forward.1} parent=1 // pred_region
      %99 = dma.done [#allocation8], 2048
    $region57: #{variable_nn_forward.1} parent=1 // pred_fallthru
      _
    %v100 = vld [vmem:[%s0] sm:$0xf]
    %v101 = vld [vmem:[#allocation2] sm:$0xf]
    %v102 = vld [vmem:[#allocation2 + $0x4] sm:$0xf]
    %v103 = vld [vmem:[#allocation2 + $0x8] sm:$0xf]
    %v104 = vld [vmem:[#allocation2 + $0xc] sm:$0xf]
    %v105 = vld [vmem:[#allocation2 + $0x10] sm:$0xf]
    %v106 = vld [vmem:[#allocation2 + $0x14] sm:$0xf]
    %v107 = vld [vmem:[#allocation2 + $0x18] sm:$0xf]
    %v108 = vld [vmem:[#allocation2 + $0x1c] sm:$0xf]
    %v109 = vld [vmem:[#allocation2 + $0x20] sm:$0xf]
    %v110 = vld [vmem:[#allocation2 + $0x24] sm:$0xf]
    %v111 = vld [vmem:[#allocation2 + $0x28] sm:$0xf]
    %v112 = vld [vmem:[#allocation2 + $0x2c] sm:$0xf]
    %v113 = vld [vmem:[#allocation2 + $0x30] sm:$0xf]
    %v114 = vld [vmem:[#allocation2 + $0x34] sm:$0xf]
    %v115 = vld [vmem:[#allocation2 + $0x38] sm:$0xf]
    %v116 = vld [vmem:[#allocation2 + $0x3c] sm:$0xf]
    %v117 = vld [vmem:[%s2] sm:$0x1]
    %v119 = vperm.slane %v117, 0
    %v137 = vunpack.c.l.b16 %v101
    %v138 = vunpack.c.l.b16 %v102
    %v139 = vunpack.c.l.b16 %v103
    %v140 = vunpack.c.l.b16 %v104
    %v141 = vunpack.c.l.b16 %v105
    %v142 = vunpack.c.l.b16 %v106
    %v143 = vunpack.c.l.b16 %v107
    %v144 = vunpack.c.l.b16 %v108
    %v145 = vunpack.c.l.b16 %v109
    %v146 = vunpack.c.l.b16 %v110
    %v147 = vunpack.c.l.b16 %v111
    %v148 = vunpack.c.l.b16 %v112
    %v149 = vunpack.c.l.b16 %v113
    %v150 = vunpack.c.l.b16 %v114
    %v151 = vunpack.c.l.b16 %v115
    %v152 = vunpack.c.l.b16 %v116
    %v153 = vpack.c.b16 %v138, %v137
    %v154 = vpack.c.b16 %v140, %v139
    %v155 = vpack.c.b16 %v142, %v141
    %v156 = vpack.c.b16 %v144, %v143
    %v157 = vpack.c.b16 %v146, %v145
    %v158 = vpack.c.b16 %v148, %v147
    %v159 = vpack.c.b16 %v150, %v149
    %v160 = vpack.c.b16 %v152, %v151
    %169 = vmatpush.bf16.msra.mxu0 %v160
    %170 = vmatpush.bf16.msra.mxu0 %v159
    %171 = vmatpush.bf16.msra.mxu0 %v158
    %172 = vmatpush.bf16.msra.mxu0 %v157
    %173 = vmatpush.bf16.msra.mxu0 %v156
    %174 = vmatpush.bf16.msra.mxu0 %v155
    %175 = vmatpush.bf16.msra.mxu0 %v154
    %176 = vmatpush.bf16.msra.mxu0 %v153
    %177 = vmatmul.bf16.gmra.mxu0 %v100
    %v178 = vpop.f32.mrf.mxu0
    %v179 = vadd.f32 %v119, %v178
    %v180 = vpop.f32.mrf.mxu0
    %181 = vdwg.mxu0
    %v182 = vmax.f32 %v179, 0.0
    %v183 = vpack.c.bf16 %v182, %v182
    %v184 = vld [vmem:[#allocation4] sm:$0xf]
    %v185 = vld [vmem:[#allocation4 + $0x4] sm:$0xf]
    %v186 = vld [vmem:[#allocation4 + $0x8] sm:$0xf]
    %v187 = vld [vmem:[#allocation4 + $0xc] sm:$0xf]
    %v188 = vld [vmem:[#allocation4 + $0x10] sm:$0xf]
    %v189 = vld [vmem:[#allocation4 + $0x14] sm:$0xf]
    %v190 = vld [vmem:[#allocation4 + $0x18] sm:$0xf]
    %v191 = vld [vmem:[#allocation4 + $0x1c] sm:$0xf]
    %v192 = vld [vmem:[#allocation4 + $0x20] sm:$0xf]
    %v193 = vld [vmem:[#allocation4 + $0x24] sm:$0xf]
    %v194 = vld [vmem:[#allocation4 + $0x28] sm:$0xf]
    %v195 = vld [vmem:[#allocation4 + $0x2c] sm:$0xf]
    %v196 = vld [vmem:[#allocation4 + $0x30] sm:$0xf]
    %v197 = vld [vmem:[#allocation4 + $0x34] sm:$0xf]
    %v198 = vld [vmem:[#allocation4 + $0x38] sm:$0xf]
    %v199 = vld [vmem:[#allocation4 + $0x3c] sm:$0xf]
    %v200 = vld [vmem:[%s4] sm:$0x1]
    %v202 = vperm.slane %v200, 0
    %v220 = vunpack.c.l.b16 %v184
    %v221 = vunpack.c.l.b16 %v185
    %v222 = vunpack.c.l.b16 %v186
    %v223 = vunpack.c.l.b16 %v187
    %v224 = vunpack.c.l.b16 %v188
    %v225 = vunpack.c.l.b16 %v189
    %v226 = vunpack.c.l.b16 %v190
    %v227 = vunpack.c.l.b16 %v191
    %v228 = vunpack.c.l.b16 %v192
    %v229 = vunpack.c.l.b16 %v193
    %v230 = vunpack.c.l.b16 %v194
    %v231 = vunpack.c.l.b16 %v195
    %v232 = vunpack.c.l.b16 %v196
    %v233 = vunpack.c.l.b16 %v197
    %v234 = vunpack.c.l.b16 %v198
    %v235 = vunpack.c.l.b16 %v199
    %v236 = vpack.c.b16 %v221, %v220
    %v237 = vpack.c.b16 %v223, %v222
    %v238 = vpack.c.b16 %v225, %v224
    %v239 = vpack.c.b16 %v227, %v226
    %v240 = vpack.c.b16 %v229, %v228
    %v241 = vpack.c.b16 %v231, %v230
    %v242 = vpack.c.b16 %v233, %v232
    %v243 = vpack.c.b16 %v235, %v234
    %252 = vmatpush.bf16.msra.mxu0 %v243
    %253 = vmatpush.bf16.msra.mxu0 %v242
    %254 = vmatpush.bf16.msra.mxu0 %v241
    %255 = vmatpush.bf16.msra.mxu0 %v240
    %256 = vmatpush.bf16.msra.mxu0 %v239
    %257 = vmatpush.bf16.msra.mxu0 %v238
    %258 = vmatpush.bf16.msra.mxu0 %v237
    %259 = vmatpush.bf16.msra.mxu0 %v236
    %260 = vmatmul.bf16.gmra.mxu0 %v183
    %v261 = vpop.f32.mrf.mxu0
    %v262 = vadd.f32 %v202, %v261
    %v263 = vpop.f32.mrf.mxu0
    %264 = vdwg.mxu0
    %v265 = vmax.f32 %v262, 0.0
    %v266 = vpack.c.bf16 %v265, %v265
    %v267 = vld [vmem:[#allocation6] sm:$0xf]
    %v268 = vld [vmem:[#allocation6 + $0x4] sm:$0xf]
    %v269 = vld [vmem:[#allocation6 + $0x8] sm:$0xf]
    %v270 = vld [vmem:[#allocation6 + $0xc] sm:$0xf]
    %v271 = vld [vmem:[#allocation6 + $0x10] sm:$0xf]
    %v272 = vld [vmem:[#allocation6 + $0x14] sm:$0xf]
    %v273 = vld [vmem:[#allocation6 + $0x18] sm:$0xf]
    %v274 = vld [vmem:[#allocation6 + $0x1c] sm:$0xf]
    %v275 = vld [vmem:[#allocation6 + $0x20] sm:$0xf]
    %v276 = vld [vmem:[#allocation6 + $0x24] sm:$0xf]
    %v277 = vld [vmem:[#allocation6 + $0x28] sm:$0xf]
    %v278 = vld [vmem:[#allocation6 + $0x2c] sm:$0xf]
    %v279 = vld [vmem:[#allocation6 + $0x30] sm:$0xf]
    %v280 = vld [vmem:[#allocation6 + $0x34] sm:$0xf]
    %v281 = vld [vmem:[#allocation6 + $0x38] sm:$0xf]
    %v282 = vld [vmem:[#allocation6 + $0x3c] sm:$0xf]
    %v283 = vld [vmem:[%s6] sm:$0x1]
    %v285 = vperm.slane %v283, 0
    %v303 = vunpack.c.l.b16 %v267
    %v304 = vunpack.c.l.b16 %v268
    %v305 = vunpack.c.l.b16 %v269
    %v306 = vunpack.c.l.b16 %v270
    %v307 = vunpack.c.l.b16 %v271
    %v308 = vunpack.c.l.b16 %v272
    %v309 = vunpack.c.l.b16 %v273
    %v310 = vunpack.c.l.b16 %v274
    %v311 = vunpack.c.l.b16 %v275
    %v312 = vunpack.c.l.b16 %v276
    %v313 = vunpack.c.l.b16 %v277
    %v314 = vunpack.c.l.b16 %v278
    %v315 = vunpack.c.l.b16 %v279
    %v316 = vunpack.c.l.b16 %v280
    %v317 = vunpack.c.l.b16 %v281
    %v318 = vunpack.c.l.b16 %v282
    %v319 = vpack.c.b16 %v304, %v303
    %v320 = vpack.c.b16 %v306, %v305
    %v321 = vpack.c.b16 %v308, %v307
    %v322 = vpack.c.b16 %v310, %v309
    %v323 = vpack.c.b16 %v312, %v311
    %v324 = vpack.c.b16 %v314, %v313
    %v325 = vpack.c.b16 %v316, %v315
    %v326 = vpack.c.b16 %v318, %v317
    %335 = vmatpush.bf16.msra.mxu0 %v326
    %336 = vmatpush.bf16.msra.mxu0 %v325
    %337 = vmatpush.bf16.msra.mxu0 %v324
    %338 = vmatpush.bf16.msra.mxu0 %v323
    %339 = vmatpush.bf16.msra.mxu0 %v322
    %340 = vmatpush.bf16.msra.mxu0 %v321
    %341 = vmatpush.bf16.msra.mxu0 %v320
    %342 = vmatpush.bf16.msra.mxu0 %v319
    %343 = vmatmul.bf16.gmra.mxu0 %v266
    %v344 = vpop.f32.mrf.mxu0
    %v345 = vadd.f32 %v285, %v344
    %v346 = vpop.f32.mrf.mxu0
    %347 = vdwg.mxu0
    %v348 = vpack.c.bf16 %v345, %v345
    %v349 = vld [vmem:[#allocation7] sm:$0xff]
    %v350 = vld [vmem:[#allocation7 + $0x8] sm:$0xff]
    %v351 = vld [vmem:[#allocation7 + $0x10] sm:$0xff]
    %v352 = vld [vmem:[#allocation7 + $0x18] sm:$0xff]
    %v353 = vld [vmem:[#allocation7 + $0x20] sm:$0xff]
    %v354 = vld [vmem:[#allocation7 + $0x28] sm:$0xff]
    %v355 = vld [vmem:[#allocation7 + $0x30] sm:$0xff]
    %v356 = vld [vmem:[#allocation7 + $0x38] sm:$0xff]
    %v357 = vld [vmem:[#allocation7 + $0x40] sm:$0xff]
    %v358 = vld [vmem:[#allocation7 + $0x48] sm:$0xff]
    %v359 = vld [vmem:[#allocation7 + $0x50] sm:$0xff]
    %v360 = vld [vmem:[#allocation7 + $0x58] sm:$0xff]
    %v361 = vld [vmem:[#allocation7 + $0x60] sm:$0xff]
    %v362 = vld [vmem:[#allocation7 + $0x68] sm:$0xff]
    %v363 = vld [vmem:[#allocation7 + $0x70] sm:$0xff]
    %v364 = vld [vmem:[#allocation7 + $0x78] sm:$0xff]
    %v365 = vld [vmem:[%s8] sm:$0x3]
    %v367 = vperm.slane %v365, 0
    %v368 = vperm.slane %v365, 1
    %v387 = vunpack.c.l.b16 %v349
    %v388 = vunpack.c.h.b16 %v349
    %v389 = vunpack.c.l.b16 %v350
    %v390 = vunpack.c.h.b16 %v350
    %v391 = vunpack.c.l.b16 %v351
    %v392 = vunpack.c.h.b16 %v351
    %v393 = vunpack.c.l.b16 %v352
    %v394 = vunpack.c.h.b16 %v352
    %v395 = vunpack.c.l.b16 %v353
    %v396 = vunpack.c.h.b16 %v353
    %v397 = vunpack.c.l.b16 %v354
    %v398 = vunpack.c.h.b16 %v354
    %v399 = vunpack.c.l.b16 %v355
    %v400 = vunpack.c.h.b16 %v355
    %v401 = vunpack.c.l.b16 %v356
    %v402 = vunpack.c.h.b16 %v356
    %v403 = vunpack.c.l.b16 %v357
    %v404 = vunpack.c.h.b16 %v357
    %v405 = vunpack.c.l.b16 %v358
    %v406 = vunpack.c.h.b16 %v358
    %v407 = vunpack.c.l.b16 %v359
    %v408 = vunpack.c.h.b16 %v359
    %v409 = vunpack.c.l.b16 %v360
    %v410 = vunpack.c.h.b16 %v360
    %v411 = vunpack.c.l.b16 %v361
    %v412 = vunpack.c.h.b16 %v361
    %v413 = vunpack.c.l.b16 %v362
    %v414 = vunpack.c.h.b16 %v362
    %v415 = vunpack.c.l.b16 %v363
    %v416 = vunpack.c.h.b16 %v363
    %v417 = vunpack.c.l.b16 %v364
    %v418 = vunpack.c.h.b16 %v364
    %v419 = vpack.c.b16 %v389, %v387
    %v420 = vpack.c.b16 %v390, %v388
    %v421 = vpack.c.b16 %v393, %v391
    %v422 = vpack.c.b16 %v394, %v392
    %v423 = vpack.c.b16 %v397, %v395
    %v424 = vpack.c.b16 %v398, %v396
    %v425 = vpack.c.b16 %v401, %v399
    %v426 = vpack.c.b16 %v402, %v400
    %v427 = vpack.c.b16 %v405, %v403
    %v428 = vpack.c.b16 %v406, %v404
    %v429 = vpack.c.b16 %v409, %v407
    %v430 = vpack.c.b16 %v410, %v408
    %v431 = vpack.c.b16 %v413, %v411
    %v432 = vpack.c.b16 %v414, %v412
    %v433 = vpack.c.b16 %v417, %v415
    %v434 = vpack.c.b16 %v418, %v416
    %451 = vmatpush.bf16.msra.mxu0 %v433
    %452 = vmatpush.bf16.msra.mxu0 %v431
    %453 = vmatpush.bf16.msra.mxu0 %v429
    %454 = vmatpush.bf16.msra.mxu0 %v427
    %455 = vmatpush.bf16.msra.mxu0 %v425
    %456 = vmatpush.bf16.msra.mxu0 %v423
    %457 = vmatpush.bf16.msra.mxu0 %v421
    %458 = vmatpush.bf16.msra.mxu0 %v419
    %459 = vmatmul.bf16.gmra.mxu0 %v348
    %v460 = vpop.f32.mrf.mxu0
    %v461 = vadd.f32 %v367, %v460
    %v462 = vpop.f32.mrf.mxu0
    %463 = vdwg.mxu0
    %464 = vmatpush.bf16.msra.mxu0 %v434
    %465 = vmatpush.bf16.msra.mxu0 %v432
    %466 = vmatpush.bf16.msra.mxu0 %v430
    %467 = vmatpush.bf16.msra.mxu0 %v428
    %468 = vmatpush.bf16.msra.mxu0 %v426
    %469 = vmatpush.bf16.msra.mxu0 %v424
    %470 = vmatpush.bf16.msra.mxu0 %v422
    %471 = vmatpush.bf16.msra.mxu0 %v420
    %472 = vmatmul.bf16.gmra.mxu0 %v348
    %v473 = vpop.f32.mrf.mxu0
    %v474 = vadd.f32 %v368, %v473
    %v475 = vpop.f32.mrf.mxu0
    %476 = vdwg.mxu0
    %477 = vst [vmem:[%s10] sm:$0xff] %v474
    %v479 = vrot.slane %v461, 1
    %v480 = vrot.slane %v461, 2
    %v481 = vrot.slane %v461, 3
    %v482 = vrot.slane %v461, 4
    %v483 = vrot.slane %v461, 5
    %v484 = vrot.slane %v461, 6
    %v485 = vrot.slane %v461, 7
    %v486 = vld [vmem:[%s9] sm:$0xff]
    %v487 = vperm.slane %v461, 0
    %v488 = vperm.slane %v479, 0
    %v489 = vperm.slane %v480, 0
    %v490 = vperm.slane %v481, 0
    %v491 = vperm.slane %v482, 0
    %v492 = vperm.slane %v483, 0
    %v493 = vperm.slane %v484, 0
    %v494 = vperm.slane %v485, 0
    %v503 = vadd.f32 %v487, %v486
    %v504 = vadd.f32 %v488, %v486
    %v505 = vadd.f32 %v489, %v486
    %v506 = vadd.f32 %v490, %v486
    %v507 = vadd.f32 %v491, %v486
    %v508 = vadd.f32 %v492, %v486
    %v509 = vadd.f32 %v493, %v486
    %v510 = vadd.f32 %v494, %v486
    %511 = vst [vmem:[%s11] sm:$0xff] %v503
    %512 = vst [vmem:[%s11 + $0x8] sm:$0xff] %v504
    %513 = vst [vmem:[%s11 + $0x10] sm:$0xff] %v505
    %514 = vst [vmem:[%s11 + $0x18] sm:$0xff] %v506
    %515 = vst [vmem:[%s11 + $0x20] sm:$0xff] %v507
    %516 = vst [vmem:[%s11 + $0x28] sm:$0xff] %v508
    %517 = vst [vmem:[%s11 + $0x30] sm:$0xff] %v509
    %518 = vst [vmem:[%s11 + $0x38] sm:$0xff] %v510
    // Predicated region
    $region58: #{variable_nn_forward.1} parent=1 // pred_check
      _
    $region59: #{variable_nn_forward.1} parent=1 // pred_check_branch
      %520 = sbr.rel (0) target = $region61
    $region60: #{variable_nn_forward.1} parent=1 // pred_region
      _
    $region61: #{variable_nn_forward.1} parent=1 // pred_fallthru
      _
    // Predicated region
    $region62: #{variable_nn_forward.1} parent=1 // pred_check
      _
    $region63: #{variable_nn_forward.1} parent=1 // pred_check_branch
      %522 = sbr.rel (0) target = $region65
    $region64: #{variable_nn_forward.1} parent=1 // pred_region
      _
    $region65: #{variable_nn_forward.1} parent=1 // pred_fallthru
      _
    // Predicated region
    $region66: #{variable_nn_forward.1} parent=1 // pred_check
      _
    $region67: #{variable_nn_forward.1} parent=1 // pred_check_branch
      %524 = sbr.rel (0) target = $region69
    $region68: #{variable_nn_forward.1} parent=1 // pred_region
      _
    $region69: #{variable_nn_forward.1} parent=1 // pred_fallthru
      _
    // Predicated region
    $region70: #{variable_nn_forward.1} parent=1 // pred_check
      _
    $region71: #{variable_nn_forward.1} parent=1 // pred_check_branch
      %526 = sbr.rel (0) target = $region73
    $region72: #{variable_nn_forward.1} parent=1 // pred_region
      _
    $region73: #{variable_nn_forward.1} parent=1 // pred_fallthru
      _
    %527 = vsyncpa [#allocation3], 1
    %528 = vsyncpa [#allocation5], 1
    %529 = vsyncpa [#allocation8], 1

</llo_original>
